<compile_context>
chip_gen: v7x
topology: tpu7x:2x2x1
jax: 0.10.0
libtpu: 0.0.40
codegen_flags: <defaults>
</compile_context>

<pallas_src>
import jax
import jax.numpy as jnp
from jax import lax
from jax.experimental import pallas as pl
from jax.experimental.pallas import tpu as pltpu


def _round_up(n, m):
    return ((n + m - 1) // m) * m


def _mlp_kernel(x_ref, w1_ref, b1_ref, w2_ref, b2_ref, o_ref):
    # Cast x f32 -> bf16 on the VPU right before the MXU matmul (no separate
    # XLA cast pass over HBM in the wrapper).
    x = x_ref[...].astype(jnp.bfloat16)
    # fc1: (TM, D)bf16 @ (D, H)bf16 -> f32 accumulate on the MXU.
    h = jnp.dot(x, w1_ref[...], preferred_element_type=jnp.float32)
    # Bias + ReLU in f32 on the VPU.
    h = jnp.maximum(h + b1_ref[...], 0.0)
    # out layer (H -> 1): contract H on the MXU with batch on the lane axis.
    # (1, H) x (TM, H) -> (1, TM): lane-dense result, no XLU reduction.
    z = lax.dot_general(
        w2_ref[...], h.astype(jnp.bfloat16),
        dimension_numbers=(((1,), (1,)), ((), ())),
        preferred_element_type=jnp.float32,
    ) + b2_ref[0]
    # sigmoid(z) = 0.5 * (1 + tanh(z/2)): one EUP op, lane-dense, no overflow.
    o_ref[...] = (0.5 * (1.0 + jnp.tanh(0.5 * z))).astype(o_ref.dtype)


def prepare_params(w1, b1, w2, b2):
    """One-time layout/cast work, hoisted out of the per-call path."""
    w1_t = jnp.asarray(w1).T.astype(jnp.bfloat16)               # (D, H) MXU operand
    b1_r = jnp.asarray(b1).reshape(1, -1).astype(jnp.float32)   # (1, H)
    w2_r = jnp.asarray(w2).reshape(1, -1).astype(jnp.bfloat16)  # (1, H) MXU operand
    b2_s = jnp.asarray(b2).reshape(1).astype(jnp.float32)       # (1,) SMEM scalar
    return w1_t, b1_r, w2_r, b2_s


def _pick_tile(B, D):
    """Batch tile: big enough to amortize ~0.35us/step, small enough for VMEM."""
    B128 = _round_up(B, 128)
    tm_from_x = (1 << 20) // (4 * D)          # ~1 MiB of f32 x per pipeline buffer
    tm_from_h = (4 << 20) // (4 * 128)        # cap (TM,128) f32 intermediate ~4 MiB
    tm = max(256, min(tm_from_x, tm_from_h, 16384))
    tm = _round_up(tm, 128)                   # lane-dense (1, TM) output blocks
    # v7x megacore: give the 2 TensorCores >= 2 grid steps when batch allows.
    if B128 >= 2 * 128:
        tm = min(tm, _round_up(B128 // 2, 128))
    return min(tm, B128)


def simple_mlp_forward(x, w1_t, b1_r, w2_r, b2_s):
    """x: (B, D) f32; params from prepare_params. Returns (B, 1) in x.dtype."""
    B, D = x.shape
    H = w1_t.shape[1]

    TM = _pick_tile(B, D)
    B_pad = _round_up(B, TM)            # waste bounded: <=127 rows for small B,
    grid = (B_pad // TM,)               # <=TM-1 (TM ~ B/2 or <=16K) for large B

    if B_pad != B:
        x = jnp.pad(x, ((0, B_pad - B), (0, 0)))

    # Explicit scoped-VMEM budget (raises v5e's 16 MiB default, safe on v7x).
    vmem_est = (
        2 * TM * D * 4            # x double-buffer (f32)
        + 2 * (D * H + 2 * H) * 4  # resident weights/biases (over-estimate)
        + 2 * TM * 4              # output buffers (1, TM) f32
        + 4 * TM * H * 4          # hidden intermediates + headroom
    )
    vmem_limit = int(min(max(vmem_est + (4 << 20), 32 << 20), 48 << 20))

    out = pl.pallas_call(
        _mlp_kernel,
        out_shape=jax.ShapeDtypeStruct((1, B_pad), x.dtype),
        grid=grid,
        in_specs=[
            pl.BlockSpec((TM, D), lambda i: (i, 0)),            # x tile, pipelined
            pl.BlockSpec((D, H), lambda i: (0, 0)),             # w1 resident
            pl.BlockSpec((1, H), lambda i: (0, 0)),             # b1 resident
            pl.BlockSpec((1, H), lambda i: (0, 0)),             # w2 row resident
            pl.BlockSpec(memory_space=pltpu.MemorySpace.SMEM),  # b2 scalar
        ],
        out_specs=pl.BlockSpec((1, TM), lambda i: (0, i)),      # lane-dense output
        compiler_params=pltpu.CompilerParams(
            dimension_semantics=("parallel",),
            vmem_limit_bytes=vmem_limit,
        ),
        cost_estimate=pl.CostEstimate(
            flops=2 * B_pad * D * H + 2 * B_pad * H,
            transcendentals=B_pad,
            bytes_accessed=B_pad * D * 4 + D * H * 2 + H * 6 + B_pad * 4,
        ),
    )(x, w1_t, b1_r, w2_r, b2_s)

    # (1, B_pad) lane-dense slab -> (B, 1); padded tail rows are dropped.
    return out.reshape(-1)[:B].reshape(B, 1)


def _init_linear(key, out_features, in_features, dtype=jnp.float32):
    """Deterministic init matching torch.nn.Linear default (uniform +/- 1/sqrt(fan_in))."""
    kw, kb = jax.random.split(key)
    bound = 1.0 / (in_features ** 0.5)
    w = jax.random.uniform(kw, (out_features, in_features), dtype,
                           minval=-bound, maxval=bound)
    b = jax.random.uniform(kb, (out_features,), dtype,
                           minval=-bound, maxval=bound)
    return w, b


if __name__ == "__main__":
    key = jax.random.PRNGKey(0)
    k_x, k_fc1, k_out = jax.random.split(key, 3)

    batch = 16
    input_dim = 32
    hidden = 128

    x = jax.random.normal(k_x, (batch, input_dim), jnp.float32)
    w1, b1 = _init_linear(k_fc1, hidden, input_dim)
    w2, b2 = _init_linear(k_out, 1, hidden)

    params = prepare_params(w1, b1, w2, b2)
    y = simple_mlp_forward(x, *params)
    y = jax.block_until_ready(y)

    # Reference check in plain JAX (same math as the PyTorch module, f32).
    ref = jax.nn.sigmoid(jnp.maximum(x @ w1.T + b1, 0.0) @ w2.T + b2)
    assert y.shape == (batch, 1)
    # bf16 MXU operands => tolerance on the order of 1e-2.
    assert jnp.allclose(y, ref, atol=1e-2, rtol=1e-2), float(jnp.max(jnp.abs(y - ref)))

    print("KERNEL_OK")
</pallas_src>

<mosaic_0001>
module attributes {stable_mosaic.version = 11 : i64} {
  func.func @_mlp_kernel(%arg0: i32, %arg1: memref<128x32xf32, #tpu.memory_space<vmem>>, %arg2: memref<32x128xbf16, #tpu.memory_space<vmem>>, %arg3: memref<1x128xf32, #tpu.memory_space<vmem>>, %arg4: memref<1x128xbf16, #tpu.memory_space<vmem>>, %arg5: memref<1xf32, #tpu.memory_space<smem>>, %arg6: memref<1x128xf32, #tpu.memory_space<vmem>>) attributes {dimension_semantics = [#tpu.dimension_semantics<parallel>], iteration_bounds = array<i64: 1>, scalar_prefetch = 0 : i64, scratch_operands = 0 : i64, tpu.core_type = #tpu.core_type<tc>, window_params = [{transform_indices = @transform_0, window_bounds = array<i64: 128, 32>}, {pipeline_mode = #tpu.pipeline_mode<synchronous>, transform_indices = @transform_1, window_bounds = array<i64: 32, 128>}, {pipeline_mode = #tpu.pipeline_mode<synchronous>, transform_indices = @transform_2, window_bounds = array<i64: 1, 128>}, {pipeline_mode = #tpu.pipeline_mode<synchronous>, transform_indices = @transform_3, window_bounds = array<i64: 1, 128>}, {transform_indices = @transform_4, window_bounds = array<i64: 1>}, {transform_indices = @transform_5, window_bounds = array<i64: 1, 128>}]} {
    %c0 = arith.constant 0 : index
    %c0_0 = arith.constant 0 : index
    %0 = vector.load %arg1[%c0, %c0_0] : memref<128x32xf32, #tpu.memory_space<vmem>>, vector<128x32xf32>
    %1 = arith.truncf %0 : vector<128x32xf32> to vector<128x32xbf16>
    %c0_1 = arith.constant 0 : index
    %c0_2 = arith.constant 0 : index
    %2 = vector.load %arg2[%c0_1, %c0_2] : memref<32x128xbf16, #tpu.memory_space<vmem>>, vector<32x128xbf16>
    %cst = arith.constant dense<0.000000e+00> : vector<128x128xf32>
    %3 = tpu.matmul %1, %2, %cst {dimension_numbers = #tpu.dot_dimension_numbers<[1], [0], [0], [1], [0, 0, 1, 1], [], []>} : vector<128x32xbf16>, vector<32x128xbf16>, vector<128x128xf32> -> vector<128x128xf32>
    %c0_3 = arith.constant 0 : index
    %c0_4 = arith.constant 0 : index
    %4 = vector.load %arg3[%c0_3, %c0_4] : memref<1x128xf32, #tpu.memory_space<vmem>>, vector<1x128xf32>
    %5 = vector.broadcast %4 : vector<1x128xf32> to vector<128x128xf32>
    %6 = arith.addf %3, %5 : vector<128x128xf32>
    %cst_5 = arith.constant 0.000000e+00 : f32
    %7 = vector.broadcast %cst_5 : f32 to vector<128x128xf32>
    %8 = arith.maximumf %6, %7 : vector<128x128xf32>
    %c0_6 = arith.constant 0 : index
    %c0_7 = arith.constant 0 : index
    %9 = vector.load %arg4[%c0_6, %c0_7] : memref<1x128xbf16, #tpu.memory_space<vmem>>, vector<1x128xbf16>
    %10 = arith.truncf %8 : vector<128x128xf32> to vector<128x128xbf16>
    %cst_8 = arith.constant dense<0.000000e+00> : vector<1x128xf32>
    %11 = tpu.matmul %9, %10, %cst_8 {dimension_numbers = #tpu.dot_dimension_numbers<[1], [1], [0], [0], [0, 0, 1, 0], [], []>} : vector<1x128xbf16>, vector<128x128xbf16>, vector<1x128xf32> -> vector<1x128xf32>
    %c0_9 = arith.constant 0 : index
    %12 = memref.load %arg5[%c0_9] : memref<1xf32, #tpu.memory_space<smem>>
    %13 = vector.broadcast %12 : f32 to vector<1x128xf32>
    %14 = arith.addf %11, %13 : vector<1x128xf32>
    %cst_10 = arith.constant 5.000000e-01 : f32
    %15 = vector.broadcast %cst_10 : f32 to vector<1x128xf32>
    %16 = arith.mulf %15, %14 : vector<1x128xf32>
    %17 = math.tanh %16 : vector<1x128xf32>
    %cst_11 = arith.constant 1.000000e+00 : f32
    %18 = vector.broadcast %cst_11 : f32 to vector<1x128xf32>
    %19 = arith.addf %18, %17 : vector<1x128xf32>
    %cst_12 = arith.constant 5.000000e-01 : f32
    %20 = vector.broadcast %cst_12 : f32 to vector<1x128xf32>
    %21 = arith.mulf %20, %19 : vector<1x128xf32>
    %c0_13 = arith.constant 0 : index
    %c0_14 = arith.constant 0 : index
    %22 = vector.load %arg6[%c0_13, %c0_14] : memref<1x128xf32, #tpu.memory_space<vmem>>, vector<1x128xf32>
    tpu.vector_store %arg6[%c0_13, %c0_14], %21 {strides = array<i32>} : memref<1x128xf32, #tpu.memory_space<vmem>>, vector<1x128xf32>,
    return
  }
  func.func @transform_0(%arg0: i32) -> (i32, i32) {
    %c0_i32 = arith.constant 0 : i32
    %c0_i32_0 = arith.constant 0 : i32
    return %arg0, %c0_i32 : i32, i32
  }
  func.func @transform_1(%arg0: i32) -> (i32, i32) {
    %c0_i32 = arith.constant 0 : i32
    %c0_i32_0 = arith.constant 0 : i32
    %c0_i32_1 = arith.constant 0 : i32
    return %c0_i32, %c0_i32_0 : i32, i32
  }
  func.func @transform_2(%arg0: i32) -> (i32, i32) {
    %c0_i32 = arith.constant 0 : i32
    %c0_i32_0 = arith.constant 0 : i32
    %c0_i32_1 = arith.constant 0 : i32
    return %c0_i32, %c0_i32_0 : i32, i32
  }
  func.func @transform_3(%arg0: i32) -> (i32, i32) {
    %c0_i32 = arith.constant 0 : i32
    %c0_i32_0 = arith.constant 0 : i32
    %c0_i32_1 = arith.constant 0 : i32
    return %c0_i32, %c0_i32_0 : i32, i32
  }
  func.func @transform_4(%arg0: i32) -> i32 {
    %c0_i32 = arith.constant 0 : i32
    %c0_i32_0 = arith.constant 0 : i32
    return %c0_i32 : i32
  }
  func.func @transform_5(%arg0: i32) -> (i32, i32) {
    %c0_i32 = arith.constant 0 : i32
    %c0_i32_0 = arith.constant 0 : i32
    return %c0_i32, %arg0 : i32, i32
  }
}

</mosaic_0001>

<llo_original>
// kernel: tpu_custom_call.1
$region0: #{tpu_custom_call.1}
  #allocation0 [shape = 'u32[]', space=smem, size = 0x4, offset = 0x4, fixed_abs, tag = 'smem constant byte address 0x4 - core index']
  #allocation1 [shape = 'u32[144,128]{1,0:T(1,128)}', space=vmem, size = 0x12000, scoped, tag = 'internal scratch']
  #allocation2 [shape = 'f32[1]{0:T(128)S(6)}', space=smem, size = 0x200, scoped, tag = 'scoped memory for tpu_custom_call.1']
  %s0 = inlined_call_operand.vmem [shape: f32[128,32], index: 0, kind: input, shape index: {}]
  %s1 = inlined_call_operand.vmem [shape: bf16[32,128], index: 1, kind: input, shape index: {}]
  %s2 = inlined_call_operand.vmem [shape: f32[1,128], index: 2, kind: input, shape index: {}]
  %s3 = inlined_call_operand.vmem [shape: bf16[1,128], index: 3, kind: input, shape index: {}]
  %s4 = inlined_call_operand.<no memory space> [shape: f32[1], index: 4, kind: input, shape index: {}]
  %s5 = inlined_call_operand.hbm [shape: f32[1,128], index: 5, kind: output, shape index: {}]
  %s6 = sld [smem:[#allocation0]]
  $region30: #{tpu_custom_call.1} parent=0
    _
  %s8 = ssub.s32 1, %s6
  %s9 = scalar_select 0, %s8, %s6
  %10 = sst [smem:[#allocation2]] %s4
  $region1: #{tpu_custom_call.1} parent=0
    #allocation3 [shape = 'u8[512]{0}', space=vmem, size = 0x400, scoped, tag = 'output window, operand 0, single buffered']
    #allocation4 [shape = 's32[1]{0}', space=sflag, size = 0x4, scoped, tag = 'scoped memory for tpu_custom_call.1']
    %11 = vsyncpa [#allocation4], 0
    // Predicated region
    $region2: #{tpu_custom_call.1} parent=1 // pred_check
      _
    $region3: #{tpu_custom_call.1} parent=1 // pred_check_branch
      %13 = sbr.rel (0) target = $region5
    $region4: #{tpu_custom_call.1} parent=1 // pred_region
      _
    $region5: #{tpu_custom_call.1} parent=1 // pred_fallthru
      _
    // Predicated region
    $region6: #{tpu_custom_call.1} parent=1 // pred_check
      _
    $region7: #{tpu_custom_call.1} parent=1 // pred_check_branch
      %15 = sbr.rel (0) target = $region9
    $region8: #{tpu_custom_call.1} parent=1 // pred_region
      _
    $region9: #{tpu_custom_call.1} parent=1 // pred_fallthru
      _
    // Predicated region
    $region10: #{tpu_custom_call.1} parent=1 // pred_check
      _
    $region11: #{tpu_custom_call.1} parent=1 // pred_check_branch
      %17 = sbr.rel (0) target = $region13
    $region12: #{tpu_custom_call.1} parent=1 // pred_region
      _
    $region13: #{tpu_custom_call.1} parent=1 // pred_fallthru
      _
    // Predicated region
    $region14: #{tpu_custom_call.1} parent=1 // pred_check
      _
    $region15: #{tpu_custom_call.1} parent=1 // pred_check_branch
      %19 = sbr.rel (0) target = $region17
    $region16: #{tpu_custom_call.1} parent=1 // pred_region
      _
    $region17: #{tpu_custom_call.1} parent=1 // pred_fallthru
      _
    // Predicated region
    $region18: #{tpu_custom_call.1} parent=1 // pred_check
      _
    $region19: #{tpu_custom_call.1} parent=1 // pred_check_branch
      %21 = sbr.rel (0) target = $region21
    $region20: #{tpu_custom_call.1} parent=1 // pred_region
      _
    $region21: #{tpu_custom_call.1} parent=1 // pred_fallthru
      _
    %v23 = vld [vmem:[%s0] sm:$0xff]
    %v24 = vld [vmem:[%s0 + $0x8] sm:$0xff]
    %v25 = vld [vmem:[%s0 + $0x10] sm:$0xff]
    %v26 = vld [vmem:[%s0 + $0x18] sm:$0xff]
    %v27 = vld [vmem:[%s0 + $0x20] sm:$0xff]
    %v28 = vld [vmem:[%s0 + $0x28] sm:$0xff]
    %v29 = vld [vmem:[%s0 + $0x30] sm:$0xff]
    %v30 = vld [vmem:[%s0 + $0x38] sm:$0xff]
    %v31 = vld [vmem:[%s0 + $0x40] sm:$0xff]
    %v32 = vld [vmem:[%s0 + $0x48] sm:$0xff]
    %v33 = vld [vmem:[%s0 + $0x50] sm:$0xff]
    %v34 = vld [vmem:[%s0 + $0x58] sm:$0xff]
    %v35 = vld [vmem:[%s0 + $0x60] sm:$0xff]
    %v36 = vld [vmem:[%s0 + $0x68] sm:$0xff]
    %v37 = vld [vmem:[%s0 + $0x70] sm:$0xff]
    %v38 = vld [vmem:[%s0 + $0x78] sm:$0xff]
    %v39 = vpack.c.bf16 %v24, %v23
    %v40 = vpack.c.bf16 %v26, %v25
    %v41 = vpack.c.bf16 %v28, %v27
    %v42 = vpack.c.bf16 %v30, %v29
    %v43 = vpack.c.bf16 %v32, %v31
    %v44 = vpack.c.bf16 %v34, %v33
    %v45 = vpack.c.bf16 %v36, %v35
    %v46 = vpack.c.bf16 %v38, %v37
    %v47 = vld [vmem:[%s1] sm:$0xf]
    %v48 = vld [vmem:[%s1 + $0x4] sm:$0xf]
    %v49 = vld [vmem:[%s1 + $0x8] sm:$0xf]
    %v50 = vld [vmem:[%s1 + $0xc] sm:$0xf]
    %v51 = vld [vmem:[%s2] sm:$0x1]
    %v53 = vlaneseq
    %v54 = vshrl.u32 %v53, 7
    %v55 = vsub.s32 0, %v54
    %v56 = vrot.slane %v51, %v55
    %v62 = vunpack.c.l.b16 %v47
    %v63 = vunpack.c.l.b16 %v48
    %v64 = vunpack.c.l.b16 %v49
    %v65 = vunpack.c.l.b16 %v50
    %v66 = vpack.c.b16 %v63, %v62
    %v67 = vpack.c.b16 %v65, %v64
    %vm70 = vcmask 261120
    %v72 = vsel %vm70, %v39, 0
    %v75 = vsel %vm70, %v40, 0
    %v78 = vsel %vm70, %v41, 0
    %v81 = vsel %vm70, %v42, 0
    %v84 = vsel %vm70, %v43, 0
    %v87 = vsel %vm70, %v44, 0
    %v90 = vsel %vm70, %v45, 0
    %v93 = vsel %vm70, %v46, 0
    %95 = vmatprep.subr.bf16.mxu0 0
    %96 = vmatpush1.bf16.msra.mxu0 %v66
    %97 = vmatprep.subr.bf16.mxu0 0
    %98 = vmatpush1.bf16.msra.mxu0 %v67
    %99 = vmatprep.subr.bf16.mxu0 0
    %100 = vmatpush1.bf16.msra.mxu0 0
    %101 = vmatprep.subr.bf16.mxu0 0
    %102 = vmatpush1.bf16.msra.mxu0 0
    %103 = vmatprep.subr.bf16.mxu0 0
    %104 = vmatpush1.bf16.msra.mxu0 0
    %105 = vmatprep.subr.bf16.mxu0 0
    %106 = vmatpush1.bf16.msra.mxu0 0
    %107 = vmatprep.subr.bf16.mxu0 0
    %108 = vmatpush1.bf16.msra.mxu0 0
    %109 = vmatprep.subr.bf16.mxu0 0
    %110 = vmatpush1.bf16.msra.mxu0 0
    %111 = vmatprep.subr.bf16.mxu0 0
    %112 = vmatpush1.bf16.msra.mxu0 0
    %113 = vmatprep.subr.bf16.mxu0 0
    %114 = vmatpush1.bf16.msra.mxu0 0
    %115 = vmatprep.subr.bf16.mxu0 0
    %116 = vmatpush1.bf16.msra.mxu0 0
    %117 = vmatprep.subr.bf16.mxu0 0
    %118 = vmatpush1.bf16.msra.mxu0 0
    %119 = vmatprep.subr.bf16.mxu0 0
    %120 = vmatpush1.bf16.msra.mxu0 0
    %121 = vmatprep.subr.bf16.mxu0 0
    %122 = vmatpush1.bf16.msra.mxu0 0
    %123 = vmatprep.subr.bf16.mxu0 0
    %124 = vmatpush1.bf16.msra.mxu0 0
    %125 = vmatprep.subr.bf16.mxu0 0
    %126 = vmatpush1.bf16.msra.mxu0 0
    %127 = vmatprep.mubr.bf16.mxu0 0
    %128 = vmatmul.mubr.bf16.gmra.mrb[0].mxu0 %v72
    %v129 = vpop.f32.mrb[0].mxu0
    %v130 = vadd.f32 %v56, %v129
    %v131 = vpop.f32.mrb[0].mxu0
    %v132 = vpop.f32.mrb[0].mxu0
    %v133 = vadd.f32 %v56, %v132
    %v134 = vpop.f32.mrb[0].mxu0
    %135 = vmatprep.mubr.bf16.mxu0 0
    %136 = vmatmul.mubr.bf16.gmra.mrb[0].mxu0 %v75
    %v137 = vpop.f32.mrb[0].mxu0
    %v138 = vadd.f32 %v56, %v137
    %v139 = vpop.f32.mrb[0].mxu0
    %v140 = vpop.f32.mrb[0].mxu0
    %v141 = vadd.f32 %v56, %v140
    %v142 = vpop.f32.mrb[0].mxu0
    %143 = vmatprep.mubr.bf16.mxu0 0
    %144 = vmatmul.mubr.bf16.gmra.mrb[0].mxu0 %v78
    %v145 = vpop.f32.mrb[0].mxu0
    %v146 = vadd.f32 %v56, %v145
    %v147 = vpop.f32.mrb[0].mxu0
    %v148 = vpop.f32.mrb[0].mxu0
    %v149 = vadd.f32 %v56, %v148
    %v150 = vpop.f32.mrb[0].mxu0
    %151 = vmatprep.mubr.bf16.mxu0 0
    %152 = vmatmul.mubr.bf16.gmra.mrb[0].mxu0 %v81
    %v153 = vpop.f32.mrb[0].mxu0
    %v154 = vadd.f32 %v56, %v153
    %v155 = vpop.f32.mrb[0].mxu0
    %v156 = vpop.f32.mrb[0].mxu0
    %v157 = vadd.f32 %v56, %v156
    %v158 = vpop.f32.mrb[0].mxu0
    %159 = vmatprep.mubr.bf16.mxu0 0
    %160 = vmatmul.mubr.bf16.gmra.mrb[0].mxu0 %v84
    %v161 = vpop.f32.mrb[0].mxu0
    %v162 = vadd.f32 %v56, %v161
    %v163 = vpop.f32.mrb[0].mxu0
    %v164 = vpop.f32.mrb[0].mxu0
    %v165 = vadd.f32 %v56, %v164
    %v166 = vpop.f32.mrb[0].mxu0
    %167 = vmatprep.mubr.bf16.mxu0 0
    %168 = vmatmul.mubr.bf16.gmra.mrb[0].mxu0 %v87
    %v169 = vpop.f32.mrb[0].mxu0
    %v170 = vadd.f32 %v56, %v169
    %v171 = vpop.f32.mrb[0].mxu0
    %v172 = vpop.f32.mrb[0].mxu0
    %v173 = vadd.f32 %v56, %v172
    %v174 = vpop.f32.mrb[0].mxu0
    %175 = vmatprep.mubr.bf16.mxu0 0
    %176 = vmatmul.mubr.bf16.gmra.mrb[0].mxu0 %v90
    %v177 = vpop.f32.mrb[0].mxu0
    %v178 = vadd.f32 %v56, %v177
    %v179 = vpop.f32.mrb[0].mxu0
    %v180 = vpop.f32.mrb[0].mxu0
    %v181 = vadd.f32 %v56, %v180
    %v182 = vpop.f32.mrb[0].mxu0
    %183 = vmatprep.mubr.bf16.mxu0 0
    %184 = vmatmul.mubr.bf16.gmra.mrb[0].mxu0 %v93
    %v185 = vpop.f32.mrb[0].mxu0
    %v186 = vadd.f32 %v56, %v185
    %v187 = vpop.f32.mrb[0].mxu0
    %v188 = vpop.f32.mrb[0].mxu0
    %v189 = vadd.f32 %v56, %v188
    %v190 = vpop.f32.mrb[0].mxu0
    %191 = vdwg.mxu0
    %v192 = vmax.f32 %v130, 0.0
    %v193 = vmax.f32 %v133, 0.0
    %v194 = vmax.f32 %v138, 0.0
    %v195 = vmax.f32 %v141, 0.0
    %v196 = vmax.f32 %v146, 0.0
    %v197 = vmax.f32 %v149, 0.0
    %v198 = vmax.f32 %v154, 0.0
    %v199 = vmax.f32 %v157, 0.0
    %v200 = vmax.f32 %v162, 0.0
    %v201 = vmax.f32 %v165, 0.0
    %v202 = vmax.f32 %v170, 0.0
    %v203 = vmax.f32 %v173, 0.0
    %v204 = vmax.f32 %v178, 0.0
    %v205 = vmax.f32 %v181, 0.0
    %v206 = vmax.f32 %v186, 0.0
    %v207 = vmax.f32 %v189, 0.0
    %v208 = vld [vmem:[%s3] sm:$0x1]
    %v209 = vpack.c.bf16 %v193, %v192
    %v210 = vpack.c.bf16 %v195, %v194
    %v211 = vpack.c.bf16 %v197, %v196
    %v212 = vpack.c.bf16 %v199, %v198
    %v213 = vpack.c.bf16 %v201, %v200
    %v214 = vpack.c.bf16 %v203, %v202
    %v215 = vpack.c.bf16 %v205, %v204
    %v216 = vpack.c.bf16 %v207, %v206
    %s217 = sld [smem:[#allocation2]]
    %v218 = vstv %s217
    %219 = vmatprep.subr.bf16.mxu0 0
    %220 = vmatpush1.bf16.xpose.msra.mxu0 %v209
    %221 = vmatprep.subr.bf16.mxu0 0
    %222 = vmatpush1.bf16.xpose.msra.mxu0 %v210
    %223 = vmatprep.subr.bf16.mxu0 0
    %224 = vmatpush1.bf16.xpose.msra.mxu0 %v211
    %225 = vmatprep.subr.bf16.mxu0 0
    %226 = vmatpush1.bf16.xpose.msra.mxu0 %v212
    %227 = vmatprep.subr.bf16.mxu0 0
    %228 = vmatpush1.bf16.xpose.msra.mxu0 %v213
    %229 = vmatprep.subr.bf16.mxu0 0
    %230 = vmatpush1.bf16.xpose.msra.mxu0 %v214
    %231 = vmatprep.subr.bf16.mxu0 0
    %232 = vmatpush1.bf16.xpose.msra.mxu0 %v215
    %233 = vmatprep.subr.bf16.mxu0 0
    %234 = vmatpush1.bf16.xpose.msra.mxu0 %v216
    %235 = vmatprep.subr.bf16.mxu0 0
    %236 = vmatpush1.bf16.xpose.msra.mxu0 0
    %237 = vmatprep.subr.bf16.mxu0 0
    %238 = vmatpush1.bf16.xpose.msra.mxu0 0
    %239 = vmatprep.subr.bf16.mxu0 0
    %240 = vmatpush1.bf16.xpose.msra.mxu0 0
    %241 = vmatprep.subr.bf16.mxu0 0
    %242 = vmatpush1.bf16.xpose.msra.mxu0 0
    %243 = vmatprep.subr.bf16.mxu0 0
    %244 = vmatpush1.bf16.xpose.msra.mxu0 0
    %245 = vmatprep.subr.bf16.mxu0 0
    %246 = vmatpush1.bf16.xpose.msra.mxu0 0
    %247 = vmatprep.subr.bf16.mxu0 0
    %248 = vmatpush1.bf16.xpose.msra.mxu0 0
    %249 = vmatprep.subr.bf16.mxu0 0
    %250 = vmatpush1.bf16.xpose.msra.mxu0 0
    %251 = vmatprep.mubr.bf16.mxu0 0
    %252 = vmatmul.mubr.bf16.gmra.mrb[0].mxu0 %v208
    %v253 = vpop.f32.mrb[0].mxu0
    %v254 = vadd.f32 %v218, %v253
    %v255 = vpop.f32.mrb[0].mxu0
    %v256 = vpop.f32.mrb[0].mxu0
    %v257 = vpop.f32.mrb[0].mxu0
    %258 = vdwg.mxu0
    %v259 = vmul.f32 %v254, 0.5
    %v260 = vtanh.pop %v259
    %v261 = vadd.f32 %v260, 1.0
    %v262 = vmul.f32 %v261, 0.5
    %263 = vst [vmem:[#allocation3] sm:$0x1] %v262
    // Predicated region
    $region22: #{tpu_custom_call.1} parent=1 // pred_check
      _
    $region23: #{tpu_custom_call.1} parent=1 // pred_check_branch
      %265 = sbr.rel (0) target = $region25
    $region24: #{tpu_custom_call.1} parent=1 // pred_region
      %s267 = ssub.s32 16, 16
      %268 = vsyncadd [#allocation4], %s267
      %s270 = sshll.u32 [#allocation3], 4
      %s271 = int_to_ptr.vmem [resolvable:$true] %s270
      %273 = dma.vmem_to_hbm [thread:$0]  %s271, 16, %s5, [#allocation4]
    $region25: #{tpu_custom_call.1} parent=1 // pred_fallthru
      _
    // Predicated region
    $region26: #{tpu_custom_call.1} parent=1 // pred_check
      _
    $region27: #{tpu_custom_call.1} parent=1 // pred_check_branch
      %275 = sbr.rel (0) target = $region29
    $region28: #{tpu_custom_call.1} parent=1 // pred_region
      %276 = dma.done [#allocation4], 16
    $region29: #{tpu_custom_call.1} parent=1 // pred_fallthru
      _
    %277 = vsyncpa [#allocation4], 1

</llo_original>
